<compile_context>
chip_gen: v7x
topology: tpu7x:2x2x1
jax: 0.10.0
libtpu: 0.0.40
codegen_flags: <defaults>
</compile_context>

<pallas_src>
import functools

import jax
import jax.numpy as jnp
from jax.experimental import pallas as pl
from jax.experimental.pallas import tpu as pltpu


def _round_up(n, m):
    return ((n + m - 1) // m) * m


def _tpu_chip_info():
    """Best-effort (tensorcores_per_chip, vmem_bytes_per_core). Never raises."""
    cores = 1
    vmem = 64 << 20                      # conservative default (v7x per-TC VMEM)
    try:
        info = pltpu.get_tpu_info()
        vmem = int(getattr(info, "vmem_capacity_bytes", vmem)) or vmem
    except Exception:
        pass
    try:
        kind = jax.devices()[0].device_kind.lower()
        if "v7" in kind:
            cores = 2                    # two TensorCores per chip on v7x
    except Exception:
        pass
    return cores, vmem


def _pick_block_batch(B, num_cores):
    """Batch tile: one big tile on single-TC chips (v5e/v6e); >=4 grid steps
    (>=2 per core) on dual-TC v7x so megacore sharding + x/out DMA overlap."""
    if num_cores <= 1:
        return min(_round_up(max(B, 1), 8), 512)
    target_steps = 4 if B >= 32 else 2
    bb = _round_up(max(1, -(-B // target_steps)), 8)
    return max(8, min(bb, 512))


def _make_kernel(num_layers, final_relu_layer):
    """Kernel body fusing all Linear/ReLU layers for one batch tile."""

    def kernel(x_ref, *refs):
        # refs = (w0, b0, w1, b1, ..., o_ref)
        o_ref = refs[-1]
        params = refs[:-1]
        h = x_ref[...]                                   # f32 (bb, d_in_p)
        for i in range(num_layers):
            if i < final_relu_layer:
                h = jnp.maximum(h, 0.0)                  # nn.ReLU before Linear
            w = params[2 * i][...]                       # bf16 (din_p, dout_p), resident
            b = params[2 * i + 1][...]                   # f32  (1, dout_p)
            # bf16 x bf16 on the MXU, f32 accumulation; bias add in f32.
            # (Activations deliberately kept f32: portable across v5e's VPU.)
            h = jnp.dot(h.astype(w.dtype), w,
                        preferred_element_type=jnp.float32) + b
        d_out = o_ref.shape[-1]                          # true (unpadded) width
        o_ref[...] = h[:, :d_out].astype(o_ref.dtype)
    return kernel


class MetricModelPallas:
    """MetricModel forward (ReLU-before-Linear MLP) as one fused Pallas kernel."""

    def __init__(self, layer_sizes, final_relu=False, weight_dtype=jnp.bfloat16):
        self.layer_sizes = tuple(int(s) for s in layer_sizes)
        assert len(self.layer_sizes) >= 2
        self.final_relu = bool(final_relu)
        self.weight_dtype = weight_dtype
        self.num_layers = len(self.layer_sizes) - 1
        self.final_relu_layer = (self.num_layers if self.final_relu
                                 else self.num_layers - 1)
        self.padded_sizes = tuple(_round_up(s, 128) for s in self.layer_sizes)
        self.embedding_size = self.layer_sizes[-1]
        self._kernel = _make_kernel(self.num_layers, self.final_relu_layer)
        self._w_p = None
        self._b_p = None
        # jit the whole forward: the x pad and batch crop fuse with the graph;
        # all config is static Python state on `self`.
        self._forward = jax.jit(self._forward_impl)

    def set_params(self, weights, biases):
        """Pad/cast parameters ONCE (hoisted out of the per-call path).

        `weights[i]` uses PyTorch nn.Linear layout (out_features, in_features).
        """
        assert len(weights) == self.num_layers and len(biases) == self.num_layers
        w_p, b_p = [], []
        for li in range(self.num_layers):
            di, do = self.layer_sizes[li], self.layer_sizes[li + 1]
            dip, dop = self.padded_sizes[li], self.padded_sizes[li + 1]
            w = jnp.asarray(weights[li])
            assert w.shape == (do, di), f"expected torch layout ({do},{di})"
            wt = jnp.transpose(w).astype(self.weight_dtype)          # (in, out)
            w_p.append(jnp.pad(wt, ((0, dip - di), (0, dop - do))))
            b = jnp.asarray(biases[li]).astype(jnp.float32).reshape(1, do)
            b_p.append(jnp.pad(b, ((0, 0), (0, dop - do))))
        self._w_p = tuple(jax.device_put(w) for w in w_p)
        self._b_p = tuple(jax.device_put(b) for b in b_p)
        return self

    def __call__(self, x):
        assert self._w_p is not None, "call set_params() first"
        return self._forward(x, self._w_p, self._b_p)

    # ---- traced under jit -------------------------------------------------
    def _forward_impl(self, x, w_p, b_p):
        B, d_in = x.shape
        assert d_in == self.layer_sizes[0]
        d_in_p = self.padded_sizes[0]
        d_out = self.layer_sizes[-1]

        num_cores, vmem_cap = _tpu_chip_info()
        block_batch = _pick_block_batch(B, num_cores)
        B_pad = _round_up(B, block_batch)

        # Single fused pad (zero rows/cols are inert: ReLU(0)=0, zero W cols).
        if (B_pad, d_in_p) != (B, d_in):
            x_p = jnp.pad(x, ((0, B_pad - B), (0, d_in_p - d_in)))
        else:
            x_p = x

        # Params: whole-array, grid-invariant, single-buffered VMEM residents
        # (no block_shape/index_map -> not double-buffered by the pipeline).
        resident = pl.BlockSpec(memory_space=pltpu.MemorySpace.VMEM)
        in_specs = [pl.BlockSpec((block_batch, d_in_p), lambda i: (i, 0))]
        args = [x_p]
        for w, b in zip(w_p, b_p):
            in_specs += [resident, resident]
            args += [w, b]
        # Output keeps the true feature width (block last dim == full array dim
        # is allowed); masked store of 16 lanes beats writing + re-cropping a
        # 128-wide padded buffer for tiny d_out.
        out_specs = pl.BlockSpec((block_batch, d_out), lambda i: (i, 0))

        # VMEM budget from the actual resident footprint, +25% headroom,
        # 32 MiB floor, capped below per-core physical VMEM (64 MiB on v7x,
        # 128 MiB on v5e/v6e).
        param_bytes = (sum(w.size * w.dtype.itemsize for w in w_p)
                       + sum(b.size * b.dtype.itemsize for b in b_p))
        x_tile_bytes = 2 * block_batch * d_in_p * x_p.dtype.itemsize   # dbl-buf
        out_tile_bytes = 2 * block_batch * max(d_out, 128) * 4
        act_bytes = 2 * block_batch * max(self.padded_sizes) * 4
        footprint = param_bytes + x_tile_bytes + out_tile_bytes + act_bytes
        cap = min(int(vmem_cap * 0.85), 100 << 20)
        vmem_limit = min(cap, max(32 << 20, int(footprint * 1.25) + (8 << 20)))
        # TODO(synk): if param_bytes ever exceeds `cap`, tile weights over an
        # output-feature grid axis ("arbitrary") instead of all-resident VMEM.

        flops = 2 * B_pad * sum(self.padded_sizes[i] * self.padded_sizes[i + 1]
                                for i in range(self.num_layers))
        bytes_accessed = (x_p.size * x_p.dtype.itemsize + param_bytes
                          + B_pad * d_out * x.dtype.itemsize)

        out = pl.pallas_call(
            self._kernel,
            out_shape=jax.ShapeDtypeStruct((B_pad, d_out), x.dtype),
            grid_spec=pl.GridSpec(grid=(B_pad // block_batch,),
                                  in_specs=in_specs, out_specs=out_specs),
            compiler_params=pltpu.CompilerParams(
                dimension_semantics=("parallel",),
                vmem_limit_bytes=vmem_limit),
            cost_estimate=pl.CostEstimate(flops=flops, transcendentals=0,
                                          bytes_accessed=bytes_accessed),
        )(*args)

        return out if B_pad == B else out[:B]


def reference_forward(x, weights, biases, layer_sizes, final_relu=False,
                      weight_dtype=jnp.bfloat16):
    """Pure-JAX reference with the same bf16-in / f32-accumulate math."""
    num_layers = len(layer_sizes) - 1
    final_relu_layer = num_layers if final_relu else num_layers - 1
    h = x.astype(jnp.float32)
    for i in range(num_layers):
        if i < final_relu_layer:
            h = jnp.maximum(h, 0.0)
        w = jnp.transpose(jnp.asarray(weights[i])).astype(weight_dtype)
        h = (jnp.dot(h.astype(weight_dtype), w,
                     preferred_element_type=jnp.float32)
             + jnp.asarray(biases[i]).astype(jnp.float32))
    return h.astype(x.dtype)


if __name__ == "__main__":
    # MetricModel(layer_sizes=[32, 64, 16], final_relu=False)
    layer_sizes = [32, 64, 16]
    final_relu = False
    batch = 256

    key = jax.random.PRNGKey(0)
    kx, *kparams = jax.random.split(key, 1 + 2 * (len(layer_sizes) - 1))
    x = jax.random.normal(kx, (batch, layer_sizes[0]), dtype=jnp.float32)

    # Deterministic init mimicking nn.Linear (torch layout: (out, in)).
    weights, biases = [], []
    for li in range(len(layer_sizes) - 1):
        fan_in, fan_out = layer_sizes[li], layer_sizes[li + 1]
        bound = 1.0 / (fan_in ** 0.5)
        w = jax.random.uniform(kparams[2 * li], (fan_out, fan_in),
                               minval=-bound, maxval=bound, dtype=jnp.float32)
        b = jax.random.uniform(kparams[2 * li + 1], (fan_out,),
                               minval=-bound, maxval=bound, dtype=jnp.float32)
        weights.append(w)
        biases.append(b)

    model = MetricModelPallas(layer_sizes, final_relu).set_params(weights, biases)
    out = jax.block_until_ready(model(x))

    ref = reference_forward(x, weights, biases, layer_sizes, final_relu)
    assert out.shape == (batch, layer_sizes[-1])
    assert jnp.allclose(out, ref, atol=2e-2, rtol=2e-2), "mismatch vs reference"

    print("KERNEL_OK")
</pallas_src>

<mosaic_0001>
module attributes {stable_mosaic.version = 11 : i64} {
  func.func @kernel(%arg0: i32, %arg1: memref<256x128xf32, #tpu.memory_space<vmem>>, %arg2: memref<128x128xbf16, #tpu.memory_space<vmem>>, %arg3: memref<1x128xf32, #tpu.memory_space<vmem>>, %arg4: memref<128x128xbf16, #tpu.memory_space<vmem>>, %arg5: memref<1x128xf32, #tpu.memory_space<vmem>>, %arg6: memref<256x16xf32, #tpu.memory_space<vmem>>) attributes {dimension_semantics = [#tpu.dimension_semantics<parallel>], iteration_bounds = array<i64: 1>, scalar_prefetch = 0 : i64, scratch_operands = 0 : i64, tpu.core_type = #tpu.core_type<tc>, window_params = [{transform_indices = @transform_0, window_bounds = array<i64: 256, 128>}, {pipeline_mode = #tpu.pipeline_mode<synchronous>, transform_indices = @transform_1, window_bounds = array<i64: 128, 128>}, {pipeline_mode = #tpu.pipeline_mode<synchronous>, transform_indices = @transform_2, window_bounds = array<i64: 1, 128>}, {pipeline_mode = #tpu.pipeline_mode<synchronous>, transform_indices = @transform_3, window_bounds = array<i64: 128, 128>}, {pipeline_mode = #tpu.pipeline_mode<synchronous>, transform_indices = @transform_4, window_bounds = array<i64: 1, 128>}, {transform_indices = @transform_5, window_bounds = array<i64: 256, 16>}]} {
    %c0 = arith.constant 0 : index
    %c0_0 = arith.constant 0 : index
    %0 = vector.load %arg1[%c0, %c0_0] : memref<256x128xf32, #tpu.memory_space<vmem>>, vector<256x128xf32>
    %cst = arith.constant 0.000000e+00 : f32
    %1 = vector.broadcast %cst : f32 to vector<256x128xf32>
    %2 = arith.maximumf %0, %1 : vector<256x128xf32>
    %c0_1 = arith.constant 0 : index
    %c0_2 = arith.constant 0 : index
    %3 = vector.load %arg2[%c0_1, %c0_2] : memref<128x128xbf16, #tpu.memory_space<vmem>>, vector<128x128xbf16>
    %c0_3 = arith.constant 0 : index
    %c0_4 = arith.constant 0 : index
    %4 = vector.load %arg3[%c0_3, %c0_4] : memref<1x128xf32, #tpu.memory_space<vmem>>, vector<1x128xf32>
    %5 = arith.truncf %2 : vector<256x128xf32> to vector<256x128xbf16>
    %cst_5 = arith.constant dense<0.000000e+00> : vector<256x128xf32>
    %6 = tpu.matmul %5, %3, %cst_5 {dimension_numbers = #tpu.dot_dimension_numbers<[1], [0], [0], [1], [0, 0, 1, 1], [], []>} : vector<256x128xbf16>, vector<128x128xbf16>, vector<256x128xf32> -> vector<256x128xf32>
    %7 = vector.broadcast %4 : vector<1x128xf32> to vector<256x128xf32>
    %8 = arith.addf %6, %7 : vector<256x128xf32>
    %c0_6 = arith.constant 0 : index
    %c0_7 = arith.constant 0 : index
    %9 = vector.load %arg4[%c0_6, %c0_7] : memref<128x128xbf16, #tpu.memory_space<vmem>>, vector<128x128xbf16>
    %c0_8 = arith.constant 0 : index
    %c0_9 = arith.constant 0 : index
    %10 = vector.load %arg5[%c0_8, %c0_9] : memref<1x128xf32, #tpu.memory_space<vmem>>, vector<1x128xf32>
    %11 = arith.truncf %8 : vector<256x128xf32> to vector<256x128xbf16>
    %cst_10 = arith.constant dense<0.000000e+00> : vector<256x128xf32>
    %12 = tpu.matmul %11, %9, %cst_10 {dimension_numbers = #tpu.dot_dimension_numbers<[1], [0], [0], [1], [0, 0, 1, 1], [], []>} : vector<256x128xbf16>, vector<128x128xbf16>, vector<256x128xf32> -> vector<256x128xf32>
    %13 = vector.broadcast %10 : vector<1x128xf32> to vector<256x128xf32>
    %14 = arith.addf %12, %13 : vector<256x128xf32>
    %15 = vector.extract_strided_slice %14 {offsets = [0, 0], sizes = [256, 16], strides = [1, 1]} : vector<256x128xf32> to vector<256x16xf32>
    %c0_11 = arith.constant 0 : index
    %c0_12 = arith.constant 0 : index
    %16 = vector.load %arg6[%c0_11, %c0_12] : memref<256x16xf32, #tpu.memory_space<vmem>>, vector<256x16xf32>
    tpu.vector_store %arg6[%c0_11, %c0_12], %15 {strides = array<i32>} : memref<256x16xf32, #tpu.memory_space<vmem>>, vector<256x16xf32>,
    return
  }
  func.func @transform_0(%arg0: i32) -> (i32, i32) {
    %c0_i32 = arith.constant 0 : i32
    %c0_i32_0 = arith.constant 0 : i32
    return %arg0, %c0_i32 : i32, i32
  }
  func.func @transform_1(%arg0: i32) -> (i32, i32) {
    %c0_i32 = arith.constant 0 : i32
    %c0_i32_0 = arith.constant 0 : i32
    %c0_i32_1 = arith.constant 0 : i32
    return %c0_i32, %c0_i32_0 : i32, i32
  }
  func.func @transform_2(%arg0: i32) -> (i32, i32) {
    %c0_i32 = arith.constant 0 : i32
    %c0_i32_0 = arith.constant 0 : i32
    %c0_i32_1 = arith.constant 0 : i32
    return %c0_i32, %c0_i32_0 : i32, i32
  }
  func.func @transform_3(%arg0: i32) -> (i32, i32) {
    %c0_i32 = arith.constant 0 : i32
    %c0_i32_0 = arith.constant 0 : i32
    %c0_i32_1 = arith.constant 0 : i32
    return %c0_i32, %c0_i32_0 : i32, i32
  }
  func.func @transform_4(%arg0: i32) -> (i32, i32) {
    %c0_i32 = arith.constant 0 : i32
    %c0_i32_0 = arith.constant 0 : i32
    %c0_i32_1 = arith.constant 0 : i32
    return %c0_i32, %c0_i32_0 : i32, i32
  }
  func.func @transform_5(%arg0: i32) -> (i32, i32) {
    %c0_i32 = arith.constant 0 : i32
    %c0_i32_0 = arith.constant 0 : i32
    return %arg0, %c0_i32 : i32, i32
  }
}

</mosaic_0001>

<llo_original>
// kernel: _forward_impl.1
$region0: #{_forward_impl.1}
  #allocation0 [shape = 'u32[]', space=smem, size = 0x4, offset = 0x4, fixed_abs, tag = 'smem constant byte address 0x4 - core index']
  #allocation1 [shape = 'u32[144,128]{1,0:T(1,128)}', space=vmem, size = 0x12000, scoped, tag = 'internal scratch']
  %s0 = inlined_call_operand.vmem [shape: f32[256,128], index: 0, kind: input, shape index: {}]
  %s1 = inlined_call_operand.vmem [shape: bf16[128,128], index: 1, kind: input, shape index: {}]
  %s2 = inlined_call_operand.vmem [shape: f32[1,128], index: 2, kind: input, shape index: {}]
  %s3 = inlined_call_operand.vmem [shape: bf16[128,128], index: 3, kind: input, shape index: {}]
  %s4 = inlined_call_operand.vmem [shape: f32[1,128], index: 4, kind: input, shape index: {}]
  %s5 = inlined_call_operand.vmem [shape: f32[256,16], index: 5, kind: output, shape index: {}]
  %s6 = sld [smem:[#allocation0]]
  $region30: #{_forward_impl.1} parent=0
    _
  %s8 = ssub.s32 1, %s6
  %s9 = scalar_select 0, %s8, %s6
  // Predicated region
  $region2: #{_forward_impl.1} parent=0 // pred_check
    _
  $region3: #{_forward_impl.1} parent=0 // pred_check_branch
    %11 = sbr.rel (0) target = $region5
  $region4: #{_forward_impl.1} parent=0 // pred_region
    _
  $region5: #{_forward_impl.1} parent=0 // pred_fallthru
    _
  // Predicated region
  $region6: #{_forward_impl.1} parent=0 // pred_check
    _
  $region7: #{_forward_impl.1} parent=0 // pred_check_branch
    %13 = sbr.rel (0) target = $region9
  $region8: #{_forward_impl.1} parent=0 // pred_region
    _
  $region9: #{_forward_impl.1} parent=0 // pred_fallthru
    _
  // Predicated region
  $region10: #{_forward_impl.1} parent=0 // pred_check
    _
  $region11: #{_forward_impl.1} parent=0 // pred_check_branch
    %15 = sbr.rel (0) target = $region13
  $region12: #{_forward_impl.1} parent=0 // pred_region
    _
  $region13: #{_forward_impl.1} parent=0 // pred_fallthru
    _
  // Predicated region
  $region14: #{_forward_impl.1} parent=0 // pred_check
    _
  $region15: #{_forward_impl.1} parent=0 // pred_check_branch
    %17 = sbr.rel (0) target = $region17
  $region16: #{_forward_impl.1} parent=0 // pred_region
    _
  $region17: #{_forward_impl.1} parent=0 // pred_fallthru
    _
  // Predicated region
  $region18: #{_forward_impl.1} parent=0 // pred_check
    _
  $region19: #{_forward_impl.1} parent=0 // pred_check_branch
    %19 = sbr.rel (0) target = $region21
  $region20: #{_forward_impl.1} parent=0 // pred_region
    _
  $region21: #{_forward_impl.1} parent=0 // pred_fallthru
    _
  %v21 = vld [vmem:[%s0] sm:$0xff]
  %v22 = vld [vmem:[%s0 + $0x8] sm:$0xff]
  %v23 = vld [vmem:[%s0 + $0x10] sm:$0xff]
  %v24 = vld [vmem:[%s0 + $0x18] sm:$0xff]
  %v25 = vld [vmem:[%s0 + $0x20] sm:$0xff]
  %v26 = vld [vmem:[%s0 + $0x28] sm:$0xff]
  %v27 = vld [vmem:[%s0 + $0x30] sm:$0xff]
  %v28 = vld [vmem:[%s0 + $0x38] sm:$0xff]
  %v29 = vld [vmem:[%s0 + $0x40] sm:$0xff]
  %v30 = vld [vmem:[%s0 + $0x48] sm:$0xff]
  %v31 = vld [vmem:[%s0 + $0x50] sm:$0xff]
  %v32 = vld [vmem:[%s0 + $0x58] sm:$0xff]
  %v33 = vld [vmem:[%s0 + $0x60] sm:$0xff]
  %v34 = vld [vmem:[%s0 + $0x68] sm:$0xff]
  %v35 = vld [vmem:[%s0 + $0x70] sm:$0xff]
  %v36 = vld [vmem:[%s0 + $0x78] sm:$0xff]
  %v37 = vld [vmem:[%s0 + $0x80] sm:$0xff]
  %v38 = vld [vmem:[%s0 + $0x88] sm:$0xff]
  %v39 = vld [vmem:[%s0 + $0x90] sm:$0xff]
  %v40 = vld [vmem:[%s0 + $0x98] sm:$0xff]
  %v41 = vld [vmem:[%s0 + $0xa0] sm:$0xff]
  %v42 = vld [vmem:[%s0 + $0xa8] sm:$0xff]
  %v43 = vld [vmem:[%s0 + $0xb0] sm:$0xff]
  %v44 = vld [vmem:[%s0 + $0xb8] sm:$0xff]
  %v45 = vld [vmem:[%s0 + $0xc0] sm:$0xff]
  %v46 = vld [vmem:[%s0 + $0xc8] sm:$0xff]
  %v47 = vld [vmem:[%s0 + $0xd0] sm:$0xff]
  %v48 = vld [vmem:[%s0 + $0xd8] sm:$0xff]
  %v49 = vld [vmem:[%s0 + $0xe0] sm:$0xff]
  %v50 = vld [vmem:[%s0 + $0xe8] sm:$0xff]
  %v51 = vld [vmem:[%s0 + $0xf0] sm:$0xff]
  %v52 = vld [vmem:[%s0 + $0xf8] sm:$0xff]
  %v53 = vmax.f32 %v21, 0.0
  %v54 = vmax.f32 %v22, 0.0
  %v55 = vmax.f32 %v23, 0.0
  %v56 = vmax.f32 %v24, 0.0
  %v57 = vmax.f32 %v25, 0.0
  %v58 = vmax.f32 %v26, 0.0
  %v59 = vmax.f32 %v27, 0.0
  %v60 = vmax.f32 %v28, 0.0
  %v61 = vmax.f32 %v29, 0.0
  %v62 = vmax.f32 %v30, 0.0
  %v63 = vmax.f32 %v31, 0.0
  %v64 = vmax.f32 %v32, 0.0
  %v65 = vmax.f32 %v33, 0.0
  %v66 = vmax.f32 %v34, 0.0
  %v67 = vmax.f32 %v35, 0.0
  %v68 = vmax.f32 %v36, 0.0
  %v69 = vmax.f32 %v37, 0.0
  %v70 = vmax.f32 %v38, 0.0
  %v71 = vmax.f32 %v39, 0.0
  %v72 = vmax.f32 %v40, 0.0
  %v73 = vmax.f32 %v41, 0.0
  %v74 = vmax.f32 %v42, 0.0
  %v75 = vmax.f32 %v43, 0.0
  %v76 = vmax.f32 %v44, 0.0
  %v77 = vmax.f32 %v45, 0.0
  %v78 = vmax.f32 %v46, 0.0
  %v79 = vmax.f32 %v47, 0.0
  %v80 = vmax.f32 %v48, 0.0
  %v81 = vmax.f32 %v49, 0.0
  %v82 = vmax.f32 %v50, 0.0
  %v83 = vmax.f32 %v51, 0.0
  %v84 = vmax.f32 %v52, 0.0
  %v85 = vld [vmem:[%s1] sm:$0xf]
  %v86 = vld [vmem:[%s1 + $0x4] sm:$0xf]
  %v87 = vld [vmem:[%s1 + $0x8] sm:$0xf]
  %v88 = vld [vmem:[%s1 + $0xc] sm:$0xf]
  %v89 = vld [vmem:[%s1 + $0x10] sm:$0xf]
  %v90 = vld [vmem:[%s1 + $0x14] sm:$0xf]
  %v91 = vld [vmem:[%s1 + $0x18] sm:$0xf]
  %v92 = vld [vmem:[%s1 + $0x1c] sm:$0xf]
  %v93 = vld [vmem:[%s1 + $0x20] sm:$0xf]
  %v94 = vld [vmem:[%s1 + $0x24] sm:$0xf]
  %v95 = vld [vmem:[%s1 + $0x28] sm:$0xf]
  %v96 = vld [vmem:[%s1 + $0x2c] sm:$0xf]
  %v97 = vld [vmem:[%s1 + $0x30] sm:$0xf]
  %v98 = vld [vmem:[%s1 + $0x34] sm:$0xf]
  %v99 = vld [vmem:[%s1 + $0x38] sm:$0xf]
  %v100 = vld [vmem:[%s1 + $0x3c] sm:$0xf]
  %v101 = vld [vmem:[%s2] sm:$0x1]
  %v102 = vpack.c.bf16 %v54, %v53
  %v103 = vpack.c.bf16 %v56, %v55
  %v104 = vpack.c.bf16 %v58, %v57
  %v105 = vpack.c.bf16 %v60, %v59
  %v106 = vpack.c.bf16 %v62, %v61
  %v107 = vpack.c.bf16 %v64, %v63
  %v108 = vpack.c.bf16 %v66, %v65
  %v109 = vpack.c.bf16 %v68, %v67
  %v110 = vpack.c.bf16 %v70, %v69
  %v111 = vpack.c.bf16 %v72, %v71
  %v112 = vpack.c.bf16 %v74, %v73
  %v113 = vpack.c.bf16 %v76, %v75
  %v114 = vpack.c.bf16 %v78, %v77
  %v115 = vpack.c.bf16 %v80, %v79
  %v116 = vpack.c.bf16 %v82, %v81
  %v117 = vpack.c.bf16 %v84, %v83
  %v119 = vlaneseq
  %v120 = vshrl.u32 %v119, 7
  %v121 = vsub.s32 0, %v120
  %v122 = vrot.slane %v101, %v121
  %v140 = vunpack.c.l.b16 %v85
  %v141 = vunpack.c.l.b16 %v86
  %v142 = vunpack.c.l.b16 %v87
  %v143 = vunpack.c.l.b16 %v88
  %v144 = vunpack.c.l.b16 %v89
  %v145 = vunpack.c.l.b16 %v90
  %v146 = vunpack.c.l.b16 %v91
  %v147 = vunpack.c.l.b16 %v92
  %v148 = vunpack.c.l.b16 %v93
  %v149 = vunpack.c.l.b16 %v94
  %v150 = vunpack.c.l.b16 %v95
  %v151 = vunpack.c.l.b16 %v96
  %v152 = vunpack.c.l.b16 %v97
  %v153 = vunpack.c.l.b16 %v98
  %v154 = vunpack.c.l.b16 %v99
  %v155 = vunpack.c.l.b16 %v100
  %v156 = vpack.c.b16 %v141, %v140
  %v157 = vpack.c.b16 %v143, %v142
  %v158 = vpack.c.b16 %v145, %v144
  %v159 = vpack.c.b16 %v147, %v146
  %v160 = vpack.c.b16 %v149, %v148
  %v161 = vpack.c.b16 %v151, %v150
  %v162 = vpack.c.b16 %v153, %v152
  %v163 = vpack.c.b16 %v155, %v154
  %172 = vmatprep.subr.bf16.mxu0 0
  %173 = vmatpush1.bf16.msra.mxu0 %v156
  %174 = vmatprep.subr.bf16.mxu0 0
  %175 = vmatpush1.bf16.msra.mxu0 %v157
  %176 = vmatprep.subr.bf16.mxu0 0
  %177 = vmatpush1.bf16.msra.mxu0 %v158
  %178 = vmatprep.subr.bf16.mxu0 0
  %179 = vmatpush1.bf16.msra.mxu0 %v159
  %180 = vmatprep.subr.bf16.mxu0 0
  %181 = vmatpush1.bf16.msra.mxu0 %v160
  %182 = vmatprep.subr.bf16.mxu0 0
  %183 = vmatpush1.bf16.msra.mxu0 %v161
  %184 = vmatprep.subr.bf16.mxu0 0
  %185 = vmatpush1.bf16.msra.mxu0 %v162
  %186 = vmatprep.subr.bf16.mxu0 0
  %187 = vmatpush1.bf16.msra.mxu0 %v163
  %188 = vmatprep.subr.bf16.mxu0 0
  %189 = vmatpush1.bf16.msra.mxu0 0
  %190 = vmatprep.subr.bf16.mxu0 0
  %191 = vmatpush1.bf16.msra.mxu0 0
  %192 = vmatprep.subr.bf16.mxu0 0
  %193 = vmatpush1.bf16.msra.mxu0 0
  %194 = vmatprep.subr.bf16.mxu0 0
  %195 = vmatpush1.bf16.msra.mxu0 0
  %196 = vmatprep.subr.bf16.mxu0 0
  %197 = vmatpush1.bf16.msra.mxu0 0
  %198 = vmatprep.subr.bf16.mxu0 0
  %199 = vmatpush1.bf16.msra.mxu0 0
  %200 = vmatprep.subr.bf16.mxu0 0
  %201 = vmatpush1.bf16.msra.mxu0 0
  %202 = vmatprep.subr.bf16.mxu0 0
  %203 = vmatpush1.bf16.msra.mxu0 0
  %204 = vmatprep.mubr.bf16.mxu0 0
  %205 = vmatmul.mubr.bf16.gmra.mrb[0].mxu0 %v102
  %v206 = vpop.f32.mrb[0].mxu0
  %v207 = vadd.f32 %v122, %v206
  %v208 = vpop.f32.mrb[0].mxu0
  %v209 = vpop.f32.mrb[0].mxu0
  %v210 = vadd.f32 %v122, %v209
  %v211 = vpop.f32.mrb[0].mxu0
  %212 = vmatprep.mubr.bf16.mxu0 0
  %213 = vmatmul.mubr.bf16.gmra.mrb[0].mxu0 %v103
  %v214 = vpop.f32.mrb[0].mxu0
  %v215 = vadd.f32 %v122, %v214
  %v216 = vpop.f32.mrb[0].mxu0
  %v217 = vpop.f32.mrb[0].mxu0
  %v218 = vadd.f32 %v122, %v217
  %v219 = vpop.f32.mrb[0].mxu0
  %220 = vmatprep.mubr.bf16.mxu0 0
  %221 = vmatmul.mubr.bf16.gmra.mrb[0].mxu0 %v104
  %v222 = vpop.f32.mrb[0].mxu0
  %v223 = vadd.f32 %v122, %v222
  %v224 = vpop.f32.mrb[0].mxu0
  %v225 = vpop.f32.mrb[0].mxu0
  %v226 = vadd.f32 %v122, %v225
  %v227 = vpop.f32.mrb[0].mxu0
  %228 = vmatprep.mubr.bf16.mxu0 0
  %229 = vmatmul.mubr.bf16.gmra.mrb[0].mxu0 %v105
  %v230 = vpop.f32.mrb[0].mxu0
  %v231 = vadd.f32 %v122, %v230
  %v232 = vpop.f32.mrb[0].mxu0
  %v233 = vpop.f32.mrb[0].mxu0
  %v234 = vadd.f32 %v122, %v233
  %v235 = vpop.f32.mrb[0].mxu0
  %236 = vmatprep.mubr.bf16.mxu0 0
  %237 = vmatmul.mubr.bf16.gmra.mrb[0].mxu0 %v106
  %v238 = vpop.f32.mrb[0].mxu0
  %v239 = vadd.f32 %v122, %v238
  %v240 = vpop.f32.mrb[0].mxu0
  %v241 = vpop.f32.mrb[0].mxu0
  %v242 = vadd.f32 %v122, %v241
  %v243 = vpop.f32.mrb[0].mxu0
  %244 = vmatprep.mubr.bf16.mxu0 0
  %245 = vmatmul.mubr.bf16.gmra.mrb[0].mxu0 %v107
  %v246 = vpop.f32.mrb[0].mxu0
  %v247 = vadd.f32 %v122, %v246
  %v248 = vpop.f32.mrb[0].mxu0
  %v249 = vpop.f32.mrb[0].mxu0
  %v250 = vadd.f32 %v122, %v249
  %v251 = vpop.f32.mrb[0].mxu0
  %252 = vmatprep.mubr.bf16.mxu0 0
  %253 = vmatmul.mubr.bf16.gmra.mrb[0].mxu0 %v108
  %v254 = vpop.f32.mrb[0].mxu0
  %v255 = vadd.f32 %v122, %v254
  %v256 = vpop.f32.mrb[0].mxu0
  %v257 = vpop.f32.mrb[0].mxu0
  %v258 = vadd.f32 %v122, %v257
  %v259 = vpop.f32.mrb[0].mxu0
  %260 = vmatprep.mubr.bf16.mxu0 0
  %261 = vmatmul.mubr.bf16.gmra.mrb[0].mxu0 %v109
  %v262 = vpop.f32.mrb[0].mxu0
  %v263 = vadd.f32 %v122, %v262
  %v264 = vpop.f32.mrb[0].mxu0
  %v265 = vpop.f32.mrb[0].mxu0
  %v266 = vadd.f32 %v122, %v265
  %v267 = vpop.f32.mrb[0].mxu0
  %268 = vmatprep.mubr.bf16.mxu0 0
  %269 = vmatmul.mubr.bf16.gmra.mrb[0].mxu0 %v110
  %v270 = vpop.f32.mrb[0].mxu0
  %v271 = vadd.f32 %v122, %v270
  %v272 = vpop.f32.mrb[0].mxu0
  %v273 = vpop.f32.mrb[0].mxu0
  %v274 = vadd.f32 %v122, %v273
  %v275 = vpop.f32.mrb[0].mxu0
  %276 = vmatprep.mubr.bf16.mxu0 0
  %277 = vmatmul.mubr.bf16.gmra.mrb[0].mxu0 %v111
  %v278 = vpop.f32.mrb[0].mxu0
  %v279 = vadd.f32 %v122, %v278
  %v280 = vpop.f32.mrb[0].mxu0
  %v281 = vpop.f32.mrb[0].mxu0
  %v282 = vadd.f32 %v122, %v281
  %v283 = vpop.f32.mrb[0].mxu0
  %284 = vmatprep.mubr.bf16.mxu0 0
  %285 = vmatmul.mubr.bf16.gmra.mrb[0].mxu0 %v112
  %v286 = vpop.f32.mrb[0].mxu0
  %v287 = vadd.f32 %v122, %v286
  %v288 = vpop.f32.mrb[0].mxu0
  %v289 = vpop.f32.mrb[0].mxu0
  %v290 = vadd.f32 %v122, %v289
  %v291 = vpop.f32.mrb[0].mxu0
  %292 = vmatprep.mubr.bf16.mxu0 0
  %293 = vmatmul.mubr.bf16.gmra.mrb[0].mxu0 %v113
  %v294 = vpop.f32.mrb[0].mxu0
  %v295 = vadd.f32 %v122, %v294
  %v296 = vpop.f32.mrb[0].mxu0
  %v297 = vpop.f32.mrb[0].mxu0
  %v298 = vadd.f32 %v122, %v297
  %v299 = vpop.f32.mrb[0].mxu0
  %300 = vmatprep.mubr.bf16.mxu0 0
  %301 = vmatmul.mubr.bf16.gmra.mrb[0].mxu0 %v114
  %v302 = vpop.f32.mrb[0].mxu0
  %v303 = vadd.f32 %v122, %v302
  %v304 = vpop.f32.mrb[0].mxu0
  %v305 = vpop.f32.mrb[0].mxu0
  %v306 = vadd.f32 %v122, %v305
  %v307 = vpop.f32.mrb[0].mxu0
  %308 = vmatprep.mubr.bf16.mxu0 0
  %309 = vmatmul.mubr.bf16.gmra.mrb[0].mxu0 %v115
  %v310 = vpop.f32.mrb[0].mxu0
  %v311 = vadd.f32 %v122, %v310
  %v312 = vpop.f32.mrb[0].mxu0
  %v313 = vpop.f32.mrb[0].mxu0
  %v314 = vadd.f32 %v122, %v313
  %v315 = vpop.f32.mrb[0].mxu0
  %316 = vmatprep.mubr.bf16.mxu0 0
  %317 = vmatmul.mubr.bf16.gmra.mrb[0].mxu0 %v116
  %v318 = vpop.f32.mrb[0].mxu0
  %v319 = vadd.f32 %v122, %v318
  %v320 = vpop.f32.mrb[0].mxu0
  %v321 = vpop.f32.mrb[0].mxu0
  %v322 = vadd.f32 %v122, %v321
  %v323 = vpop.f32.mrb[0].mxu0
  %324 = vmatprep.mubr.bf16.mxu0 0
  %325 = vmatmul.mubr.bf16.gmra.mrb[0].mxu0 %v117
  %v326 = vpop.f32.mrb[0].mxu0
  %v327 = vadd.f32 %v122, %v326
  %v328 = vpop.f32.mrb[0].mxu0
  %v329 = vpop.f32.mrb[0].mxu0
  %v330 = vadd.f32 %v122, %v329
  %v331 = vpop.f32.mrb[0].mxu0
  %332 = vdwg.mxu0
  %v333 = vld [vmem:[%s3] sm:$0xf]
  %v334 = vld [vmem:[%s3 + $0x4] sm:$0xf]
  %v335 = vld [vmem:[%s3 + $0x8] sm:$0xf]
  %v336 = vld [vmem:[%s3 + $0xc] sm:$0xf]
  %v337 = vld [vmem:[%s3 + $0x10] sm:$0xf]
  %v338 = vld [vmem:[%s3 + $0x14] sm:$0xf]
  %v339 = vld [vmem:[%s3 + $0x18] sm:$0xf]
  %v340 = vld [vmem:[%s3 + $0x1c] sm:$0xf]
  %v341 = vld [vmem:[%s3 + $0x20] sm:$0xf]
  %v342 = vld [vmem:[%s3 + $0x24] sm:$0xf]
  %v343 = vld [vmem:[%s3 + $0x28] sm:$0xf]
  %v344 = vld [vmem:[%s3 + $0x2c] sm:$0xf]
  %v345 = vld [vmem:[%s3 + $0x30] sm:$0xf]
  %v346 = vld [vmem:[%s3 + $0x34] sm:$0xf]
  %v347 = vld [vmem:[%s3 + $0x38] sm:$0xf]
  %v348 = vld [vmem:[%s3 + $0x3c] sm:$0xf]
  %v349 = vld [vmem:[%s4] sm:$0x1]
  %v350 = vpack.c.bf16 %v210, %v207
  %v351 = vpack.c.bf16 %v218, %v215
  %v352 = vpack.c.bf16 %v226, %v223
  %v353 = vpack.c.bf16 %v234, %v231
  %v354 = vpack.c.bf16 %v242, %v239
  %v355 = vpack.c.bf16 %v250, %v247
  %v356 = vpack.c.bf16 %v258, %v255
  %v357 = vpack.c.bf16 %v266, %v263
  %v358 = vpack.c.bf16 %v274, %v271
  %v359 = vpack.c.bf16 %v282, %v279
  %v360 = vpack.c.bf16 %v290, %v287
  %v361 = vpack.c.bf16 %v298, %v295
  %v362 = vpack.c.bf16 %v306, %v303
  %v363 = vpack.c.bf16 %v314, %v311
  %v364 = vpack.c.bf16 %v322, %v319
  %v365 = vpack.c.bf16 %v330, %v327
  %v367 = vlaneseq
  %v368 = vshrl.u32 %v367, 7
  %v369 = vsub.s32 0, %v368
  %v370 = vrot.slane %v349, %v369
  %v388 = vunpack.c.l.b16 %v333
  %v389 = vunpack.c.l.b16 %v334
  %v390 = vunpack.c.l.b16 %v335
  %v391 = vunpack.c.l.b16 %v336
  %v392 = vunpack.c.l.b16 %v337
  %v393 = vunpack.c.l.b16 %v338
  %v394 = vunpack.c.l.b16 %v339
  %v395 = vunpack.c.l.b16 %v340
  %v396 = vunpack.c.l.b16 %v341
  %v397 = vunpack.c.l.b16 %v342
  %v398 = vunpack.c.l.b16 %v343
  %v399 = vunpack.c.l.b16 %v344
  %v400 = vunpack.c.l.b16 %v345
  %v401 = vunpack.c.l.b16 %v346
  %v402 = vunpack.c.l.b16 %v347
  %v403 = vunpack.c.l.b16 %v348
  %v404 = vpack.c.b16 %v389, %v388
  %v405 = vpack.c.b16 %v391, %v390
  %v406 = vpack.c.b16 %v393, %v392
  %v407 = vpack.c.b16 %v395, %v394
  %v408 = vpack.c.b16 %v397, %v396
  %v409 = vpack.c.b16 %v399, %v398
  %v410 = vpack.c.b16 %v401, %v400
  %v411 = vpack.c.b16 %v403, %v402
  %420 = vmatprep.subr.bf16.mxu0 0
  %421 = vmatpush1.bf16.msra.mxu0 %v404
  %422 = vmatprep.subr.bf16.mxu0 0
  %423 = vmatpush1.bf16.msra.mxu0 %v405
  %424 = vmatprep.subr.bf16.mxu0 0
  %425 = vmatpush1.bf16.msra.mxu0 %v406
  %426 = vmatprep.subr.bf16.mxu0 0
  %427 = vmatpush1.bf16.msra.mxu0 %v407
  %428 = vmatprep.subr.bf16.mxu0 0
  %429 = vmatpush1.bf16.msra.mxu0 %v408
  %430 = vmatprep.subr.bf16.mxu0 0
  %431 = vmatpush1.bf16.msra.mxu0 %v409
  %432 = vmatprep.subr.bf16.mxu0 0
  %433 = vmatpush1.bf16.msra.mxu0 %v410
  %434 = vmatprep.subr.bf16.mxu0 0
  %435 = vmatpush1.bf16.msra.mxu0 %v411
  %436 = vmatprep.subr.bf16.mxu0 0
  %437 = vmatpush1.bf16.msra.mxu0 0
  %438 = vmatprep.subr.bf16.mxu0 0
  %439 = vmatpush1.bf16.msra.mxu0 0
  %440 = vmatprep.subr.bf16.mxu0 0
  %441 = vmatpush1.bf16.msra.mxu0 0
  %442 = vmatprep.subr.bf16.mxu0 0
  %443 = vmatpush1.bf16.msra.mxu0 0
  %444 = vmatprep.subr.bf16.mxu0 0
  %445 = vmatpush1.bf16.msra.mxu0 0
  %446 = vmatprep.subr.bf16.mxu0 0
  %447 = vmatpush1.bf16.msra.mxu0 0
  %448 = vmatprep.subr.bf16.mxu0 0
  %449 = vmatpush1.bf16.msra.mxu0 0
  %450 = vmatprep.subr.bf16.mxu0 0
  %451 = vmatpush1.bf16.msra.mxu0 0
  %452 = vmatprep.mubr.bf16.mxu0 0
  %453 = vmatmul.mubr.bf16.gmra.mrb[0].mxu0 %v350
  %v454 = vpop.f32.mrb[0].mxu0
  %v455 = vadd.f32 %v370, %v454
  %v456 = vpop.f32.mrb[0].mxu0
  %v457 = vpop.f32.mrb[0].mxu0
  %v458 = vadd.f32 %v370, %v457
  %v459 = vpop.f32.mrb[0].mxu0
  %460 = vmatprep.mubr.bf16.mxu0 0
  %461 = vmatmul.mubr.bf16.gmra.mrb[0].mxu0 %v351
  %v462 = vpop.f32.mrb[0].mxu0
  %v463 = vadd.f32 %v370, %v462
  %v464 = vpop.f32.mrb[0].mxu0
  %v465 = vpop.f32.mrb[0].mxu0
  %v466 = vadd.f32 %v370, %v465
  %v467 = vpop.f32.mrb[0].mxu0
  %468 = vmatprep.mubr.bf16.mxu0 0
  %469 = vmatmul.mubr.bf16.gmra.mrb[0].mxu0 %v352
  %v470 = vpop.f32.mrb[0].mxu0
  %v471 = vadd.f32 %v370, %v470
  %v472 = vpop.f32.mrb[0].mxu0
  %v473 = vpop.f32.mrb[0].mxu0
  %v474 = vadd.f32 %v370, %v473
  %v475 = vpop.f32.mrb[0].mxu0
  %476 = vmatprep.mubr.bf16.mxu0 0
  %477 = vmatmul.mubr.bf16.gmra.mrb[0].mxu0 %v353
  %v478 = vpop.f32.mrb[0].mxu0
  %v479 = vadd.f32 %v370, %v478
  %v480 = vpop.f32.mrb[0].mxu0
  %v481 = vpop.f32.mrb[0].mxu0
  %v482 = vadd.f32 %v370, %v481
  %v483 = vpop.f32.mrb[0].mxu0
  %484 = vmatprep.mubr.bf16.mxu0 0
  %485 = vmatmul.mubr.bf16.gmra.mrb[0].mxu0 %v354
  %v486 = vpop.f32.mrb[0].mxu0
  %v487 = vadd.f32 %v370, %v486
  %v488 = vpop.f32.mrb[0].mxu0
  %v489 = vpop.f32.mrb[0].mxu0
  %v490 = vadd.f32 %v370, %v489
  %v491 = vpop.f32.mrb[0].mxu0
  %492 = vmatprep.mubr.bf16.mxu0 0
  %493 = vmatmul.mubr.bf16.gmra.mrb[0].mxu0 %v355
  %v494 = vpop.f32.mrb[0].mxu0
  %v495 = vadd.f32 %v370, %v494
  %v496 = vpop.f32.mrb[0].mxu0
  %v497 = vpop.f32.mrb[0].mxu0
  %v498 = vadd.f32 %v370, %v497
  %v499 = vpop.f32.mrb[0].mxu0
  %500 = vmatprep.mubr.bf16.mxu0 0
  %501 = vmatmul.mubr.bf16.gmra.mrb[0].mxu0 %v356
  %v502 = vpop.f32.mrb[0].mxu0
  %v503 = vadd.f32 %v370, %v502
  %v504 = vpop.f32.mrb[0].mxu0
  %v505 = vpop.f32.mrb[0].mxu0
  %v506 = vadd.f32 %v370, %v505
  %v507 = vpop.f32.mrb[0].mxu0
  %508 = vmatprep.mubr.bf16.mxu0 0
  %509 = vmatmul.mubr.bf16.gmra.mrb[0].mxu0 %v357
  %v510 = vpop.f32.mrb[0].mxu0
  %v511 = vadd.f32 %v370, %v510
  %v512 = vpop.f32.mrb[0].mxu0
  %v513 = vpop.f32.mrb[0].mxu0
  %v514 = vadd.f32 %v370, %v513
  %v515 = vpop.f32.mrb[0].mxu0
  %516 = vmatprep.mubr.bf16.mxu0 0
  %517 = vmatmul.mubr.bf16.gmra.mrb[0].mxu0 %v358
  %v518 = vpop.f32.mrb[0].mxu0
  %v519 = vadd.f32 %v370, %v518
  %v520 = vpop.f32.mrb[0].mxu0
  %v521 = vpop.f32.mrb[0].mxu0
  %v522 = vadd.f32 %v370, %v521
  %v523 = vpop.f32.mrb[0].mxu0
  %524 = vmatprep.mubr.bf16.mxu0 0
  %525 = vmatmul.mubr.bf16.gmra.mrb[0].mxu0 %v359
  %v526 = vpop.f32.mrb[0].mxu0
  %v527 = vadd.f32 %v370, %v526
  %v528 = vpop.f32.mrb[0].mxu0
  %v529 = vpop.f32.mrb[0].mxu0
  %v530 = vadd.f32 %v370, %v529
  %v531 = vpop.f32.mrb[0].mxu0
  %532 = vmatprep.mubr.bf16.mxu0 0
  %533 = vmatmul.mubr.bf16.gmra.mrb[0].mxu0 %v360
  %v534 = vpop.f32.mrb[0].mxu0
  %v535 = vadd.f32 %v370, %v534
  %v536 = vpop.f32.mrb[0].mxu0
  %v537 = vpop.f32.mrb[0].mxu0
  %v538 = vadd.f32 %v370, %v537
  %v539 = vpop.f32.mrb[0].mxu0
  %540 = vmatprep.mubr.bf16.mxu0 0
  %541 = vmatmul.mubr.bf16.gmra.mrb[0].mxu0 %v361
  %v542 = vpop.f32.mrb[0].mxu0
  %v543 = vadd.f32 %v370, %v542
  %v544 = vpop.f32.mrb[0].mxu0
  %v545 = vpop.f32.mrb[0].mxu0
  %v546 = vadd.f32 %v370, %v545
  %v547 = vpop.f32.mrb[0].mxu0
  %548 = vmatprep.mubr.bf16.mxu0 0
  %549 = vmatmul.mubr.bf16.gmra.mrb[0].mxu0 %v362
  %v550 = vpop.f32.mrb[0].mxu0
  %v551 = vadd.f32 %v370, %v550
  %v552 = vpop.f32.mrb[0].mxu0
  %v553 = vpop.f32.mrb[0].mxu0
  %v554 = vadd.f32 %v370, %v553
  %v555 = vpop.f32.mrb[0].mxu0
  %556 = vmatprep.mubr.bf16.mxu0 0
  %557 = vmatmul.mubr.bf16.gmra.mrb[0].mxu0 %v363
  %v558 = vpop.f32.mrb[0].mxu0
  %v559 = vadd.f32 %v370, %v558
  %v560 = vpop.f32.mrb[0].mxu0
  %v561 = vpop.f32.mrb[0].mxu0
  %v562 = vadd.f32 %v370, %v561
  %v563 = vpop.f32.mrb[0].mxu0
  %564 = vmatprep.mubr.bf16.mxu0 0
  %565 = vmatmul.mubr.bf16.gmra.mrb[0].mxu0 %v364
  %v566 = vpop.f32.mrb[0].mxu0
  %v567 = vadd.f32 %v370, %v566
  %v568 = vpop.f32.mrb[0].mxu0
  %v569 = vpop.f32.mrb[0].mxu0
  %v570 = vadd.f32 %v370, %v569
  %v571 = vpop.f32.mrb[0].mxu0
  %572 = vmatprep.mubr.bf16.mxu0 0
  %573 = vmatmul.mubr.bf16.gmra.mrb[0].mxu0 %v365
  %v574 = vpop.f32.mrb[0].mxu0
  %v575 = vadd.f32 %v370, %v574
  %v576 = vpop.f32.mrb[0].mxu0
  %v577 = vpop.f32.mrb[0].mxu0
  %v578 = vadd.f32 %v370, %v577
  %v579 = vpop.f32.mrb[0].mxu0
  %580 = vdwg.mxu0
  %vm581 = vcmask 130048
  %582 = vst.msk [vmem:[%s5] sm:$0xff] %vm581, %v455
  %583 = vst.msk [vmem:[%s5 + $0x8] sm:$0xff] %vm581, %v458
  %584 = vst.msk [vmem:[%s5 + $0x10] sm:$0xff] %vm581, %v463
  %585 = vst.msk [vmem:[%s5 + $0x18] sm:$0xff] %vm581, %v466
  %586 = vst.msk [vmem:[%s5 + $0x20] sm:$0xff] %vm581, %v471
  %587 = vst.msk [vmem:[%s5 + $0x28] sm:$0xff] %vm581, %v474
  %588 = vst.msk [vmem:[%s5 + $0x30] sm:$0xff] %vm581, %v479
  %589 = vst.msk [vmem:[%s5 + $0x38] sm:$0xff] %vm581, %v482
  %590 = vst.msk [vmem:[%s5 + $0x40] sm:$0xff] %vm581, %v487
  %591 = vst.msk [vmem:[%s5 + $0x48] sm:$0xff] %vm581, %v490
  %592 = vst.msk [vmem:[%s5 + $0x50] sm:$0xff] %vm581, %v495
  %593 = vst.msk [vmem:[%s5 + $0x58] sm:$0xff] %vm581, %v498
  %594 = vst.msk [vmem:[%s5 + $0x60] sm:$0xff] %vm581, %v503
  %595 = vst.msk [vmem:[%s5 + $0x68] sm:$0xff] %vm581, %v506
  %596 = vst.msk [vmem:[%s5 + $0x70] sm:$0xff] %vm581, %v511
  %597 = vst.msk [vmem:[%s5 + $0x78] sm:$0xff] %vm581, %v514
  %598 = vst.msk [vmem:[%s5 + $0x80] sm:$0xff] %vm581, %v519
  %599 = vst.msk [vmem:[%s5 + $0x88] sm:$0xff] %vm581, %v522
  %600 = vst.msk [vmem:[%s5 + $0x90] sm:$0xff] %vm581, %v527
  %601 = vst.msk [vmem:[%s5 + $0x98] sm:$0xff] %vm581, %v530
  %602 = vst.msk [vmem:[%s5 + $0xa0] sm:$0xff] %vm581, %v535
  %603 = vst.msk [vmem:[%s5 + $0xa8] sm:$0xff] %vm581, %v538
  %604 = vst.msk [vmem:[%s5 + $0xb0] sm:$0xff] %vm581, %v543
  %605 = vst.msk [vmem:[%s5 + $0xb8] sm:$0xff] %vm581, %v546
  %606 = vst.msk [vmem:[%s5 + $0xc0] sm:$0xff] %vm581, %v551
  %607 = vst.msk [vmem:[%s5 + $0xc8] sm:$0xff] %vm581, %v554
  %608 = vst.msk [vmem:[%s5 + $0xd0] sm:$0xff] %vm581, %v559
  %609 = vst.msk [vmem:[%s5 + $0xd8] sm:$0xff] %vm581, %v562
  %610 = vst.msk [vmem:[%s5 + $0xe0] sm:$0xff] %vm581, %v567
  %611 = vst.msk [vmem:[%s5 + $0xe8] sm:$0xff] %vm581, %v570
  %612 = vst.msk [vmem:[%s5 + $0xf0] sm:$0xff] %vm581, %v575
  %613 = vst.msk [vmem:[%s5 + $0xf8] sm:$0xff] %vm581, %v578
  // Predicated region
  $region22: #{_forward_impl.1} parent=0 // pred_check
    _
  $region23: #{_forward_impl.1} parent=0 // pred_check_branch
    %615 = sbr.rel (0) target = $region25
  $region24: #{_forward_impl.1} parent=0 // pred_region
    _
  $region25: #{_forward_impl.1} parent=0 // pred_fallthru
    _
  // Predicated region
  $region26: #{_forward_impl.1} parent=0 // pred_check
    _
  $region27: #{_forward_impl.1} parent=0 // pred_check_branch
    %617 = sbr.rel (0) target = $region29
  $region28: #{_forward_impl.1} parent=0 // pred_region
    _
  $region29: #{_forward_impl.1} parent=0 // pred_fallthru
    _

</llo_original>
